<compile_context>
chip_gen: v6e
topology: v6e:2x2x1
jax: 0.10.0
libtpu: 0.0.40
codegen_flags: <defaults>
</compile_context>

<pallas_src>
import jax
import jax.numpy as jnp
from jax.experimental import pallas as pl
from jax.experimental.pallas import tpu as pltpu


def _round_up(x, m):
    return ((x + m - 1) // m) * m


_SENT = 2 ** 30          # receiver sentinel for padded messages (never matches a row)
_VMEM_LIMIT = 32 * 1024 * 1024   # safe on v7x (64 MiB phys) and v5e/v6e (128 MiB)


# ----------------------- stage A: per-message linear ------------------------ #
# h = msgs @ W + b, computed ONCE per message.  msgs is the (E, K) concatenation
# of the gathered feature parts (done in the wrapper, where it is just the gather
# destination), so the kernel runs a single (TE, K) x (K, H) MXU dot per tile.

def _msg_linear_kernel(m_ref, w_ref, b_ref, out_ref):
    m = m_ref[...].astype(jnp.bfloat16)                       # cast in-kernel
    acc = jnp.dot(m, w_ref[...], preferred_element_type=jnp.float32)
    out_ref[...] = (acc + b_ref[...]).astype(out_ref.dtype)


def _msg_linear(msgs, w, b, te):
    """msgs: (e_pad, K) fp32 -> (e_pad, H) bf16 per-message linear output."""
    e_pad, k = msgs.shape
    h_dim = w.shape[1]
    grid = (e_pad // te,)

    flops = 2 * e_pad * k * h_dim
    bytes_accessed = 4 * e_pad * k + 2 * k * h_dim + 4 * h_dim + 2 * e_pad * h_dim

    return pl.pallas_call(
        _msg_linear_kernel,
        out_shape=jax.ShapeDtypeStruct((e_pad, h_dim), jnp.bfloat16),
        grid=grid,
        in_specs=[pl.BlockSpec((te, k), lambda ei: (ei, 0)),
                  pl.BlockSpec((k, h_dim), lambda ei: (0, 0)),
                  pl.BlockSpec((1, h_dim), lambda ei: (0, 0))],
        out_specs=pl.BlockSpec((te, h_dim), lambda ei: (ei, 0)),
        compiler_params=pltpu.CompilerParams(
            dimension_semantics=("parallel",),
            vmem_limit_bytes=_VMEM_LIMIT),
        cost_estimate=pl.CostEstimate(flops=flops, transcendentals=0,
                                      bytes_accessed=bytes_accessed),
    )(msgs, w.astype(jnp.bfloat16), b)


# ---------------- stage B: block-sparse segment-sum (scatter) --------------- #
# out[r] += h[j] for every message j with (sorted, global) receiver r.
# Grid (N tiles, E tiles); receivers are sorted, so per-E-tile min/max receiver
# (scalar prefetch) lets us skip every dead (ni, ei) pair with pl.when.

def _make_scatter_kernel(tn, te):
    def kernel(emin_ref, emax_ref, rec_ref, h_ref, out_ref, acc_ref):
        ni = pl.program_id(0)
        ei = pl.program_id(1)

        @pl.when(ei == 0)
        def _():
            acc_ref[...] = jnp.zeros_like(acc_ref)

        n_start = ni * tn
        # Sorted receivers -> this E tile covers rows [emin, emax]; skip if it
        # does not overlap this N tile's row range.
        active = jnp.logical_and(emin_ref[ei] < n_start + tn,
                                 emax_ref[ei] >= n_start)

        @pl.when(active)
        def _():
            # In-register 0/1 scatter tile: (TN, TE) iota vs (1, TE) local recs,
            # selected straight to bf16 (no fp32 select / extra convert).
            row_ids = jax.lax.broadcasted_iota(jnp.int32, (tn, te), 0)
            rec_local = rec_ref[...] - n_start               # (1, TE)
            scat = jnp.where(row_ids == rec_local,
                             jnp.bfloat16(1.0), jnp.bfloat16(0.0))
            acc_ref[...] += jnp.dot(scat, h_ref[...],
                                    preferred_element_type=jnp.float32)

        @pl.when(ei == pl.num_programs(1) - 1)
        def _():
            out_ref[...] = acc_ref[...]

    return kernel


def _segment_scatter(rec_sorted, h_msgs, n_valid, tn, te, n_pad):
    """Segment-sum of h_msgs (receiver-sorted) into a (n_pad, H) fp32 buffer."""
    e_pad, h_dim = h_msgs.shape
    e_tiles = e_pad // te
    n_tiles = n_pad // tn

    blocks = rec_sorted.reshape(e_tiles, te)
    emin = jnp.min(blocks, axis=1).astype(jnp.int32)
    emax = jnp.max(jnp.where(blocks >= n_valid, -1, blocks), axis=1).astype(jnp.int32)
    rec2d = rec_sorted.reshape(1, e_pad)

    # Sorted/block-sparse estimate: each E tile touches O(1) N tiles.
    flops = 2 * (e_tiles + n_tiles) * tn * te * h_dim
    bytes_accessed = (4 * e_pad + 2 * e_pad * h_dim * n_tiles + 4 * n_pad * h_dim)

    # TODO(synk): for very large N grids, also elide the h-tile DMA of skipped
    # (ni, ei) pairs via a clamped data-dependent index_map (compute is already skipped).
    return pl.pallas_call(
        _make_scatter_kernel(tn, te),
        out_shape=jax.ShapeDtypeStruct((n_pad, h_dim), jnp.float32),
        grid_spec=pltpu.PrefetchScalarGridSpec(
            num_scalar_prefetch=2,
            grid=(n_tiles, e_tiles),
            in_specs=[pl.BlockSpec((1, te), lambda ni, ei, emn, emx: (0, ei)),
                      pl.BlockSpec((te, h_dim), lambda ni, ei, emn, emx: (ei, 0))],
            out_specs=pl.BlockSpec((tn, h_dim), lambda ni, ei, emn, emx: (ni, 0)),
            scratch_shapes=[pltpu.VMEM((tn, h_dim), jnp.float32)]),
        compiler_params=pltpu.CompilerParams(
            dimension_semantics=("parallel", "arbitrary"),
            vmem_limit_bytes=_VMEM_LIMIT),
        cost_estimate=pl.CostEstimate(flops=flops, transcendentals=0,
                                      bytes_accessed=bytes_accessed),
    )(emin, emax, rec2d, h_msgs)


# ------------------------------ h_update linear ----------------------------- #
# out = feat @ Wh0 + boundary @ Wh1 + upper @ Wh2 + b   (all widths exactly H:
# no padded zero columns are contracted, no axis-1 concat copy is written).

def _update_kernel(f_ref, bd_ref, up_ref, w0_ref, w1_ref, w2_ref, b_ref, out_ref):
    acc = jnp.dot(f_ref[...].astype(jnp.bfloat16), w0_ref[...],
                  preferred_element_type=jnp.float32)
    acc = acc + jnp.dot(bd_ref[...].astype(jnp.bfloat16), w1_ref[...],
                        preferred_element_type=jnp.float32)
    acc = acc + jnp.dot(up_ref[...].astype(jnp.bfloat16), w2_ref[...],
                        preferred_element_type=jnp.float32)
    out_ref[...] = acc + b_ref[...]


def _update_linear(feat, boundary, upper, w_blocks, bias, tn):
    n_pad, h_dim = feat.shape
    grid = (n_pad // tn,)
    w_bf = [w.astype(jnp.bfloat16) for w in w_blocks]

    in_specs = ([pl.BlockSpec((tn, h_dim), lambda ni: (ni, 0))] * 3
                + [pl.BlockSpec((h_dim, h_dim), lambda ni: (0, 0))] * 3
                + [pl.BlockSpec((1, h_dim), lambda ni: (0, 0))])

    flops = 2 * n_pad * 3 * h_dim * h_dim
    bytes_accessed = (3 * 4 * n_pad * h_dim + 3 * 2 * h_dim * h_dim
                      + 4 * h_dim + 4 * n_pad * h_dim)

    return pl.pallas_call(
        _update_kernel,
        out_shape=jax.ShapeDtypeStruct((n_pad, h_dim), jnp.float32),
        grid=grid,
        in_specs=in_specs,
        out_specs=pl.BlockSpec((tn, h_dim), lambda ni: (ni, 0)),
        compiler_params=pltpu.CompilerParams(
            dimension_semantics=("parallel",),
            vmem_limit_bytes=_VMEM_LIMIT),
        cost_estimate=pl.CostEstimate(flops=flops, transcendentals=0,
                                      bytes_accessed=bytes_accessed),
    )(feat, boundary, upper, *w_bf, bias)


# ------------------------------ CWN forward -------------------------------- #

def _prepare_messages(feat_all, rec_g, sender_gs, te):
    """Sort by receiver, gather + feature-concat the message parts, pad to te."""
    e = rec_g.shape[0]
    perm = jnp.argsort(rec_g)                       # receiver-sorted message order
    rec_s = rec_g[perm]
    parts = [feat_all[rec_s]] + [feat_all[s[perm]] for s in sender_gs]
    msgs = jnp.concatenate(parts, axis=1)           # (e, K) fp32 (gather destination)

    e_pad = _round_up(e, te)
    msgs = jnp.pad(msgs, ((0, e_pad - e), (0, 0)))
    rec_p = jnp.concatenate(
        [rec_s, jnp.full((e_pad - e,), _SENT, jnp.int32)])
    return rec_p, msgs


def cwn_layer_forward(params, node_feat, edge_feat, cycle_feat,
                      boundary_index, upper_adj_index):
    """Pallas implementation of CWNLayer.forward.

    cell_features   = [node_feat (N0,H), edge_feat (N1,H), cycle_feat (N2,H)]
    boundary_index  = [(rec_e, send_n), (rec_c, send_e)]
    upper_adj_index = [(rec_n, send_n, common_e), (rec_e, send_e, common_c)]
    """
    h = node_feat.shape[1]
    w_b, b_b = params["boundary"]     # (2H, H), (1, H)
    w_u, b_u = params["upper"]        # (3H, H), (1, H)
    w_h, b_h = params["h_update"]     # (3H, H), (1, H)

    n0, n1 = node_feat.shape[0], edge_feat.shape[0]
    n2 = cycle_feat.shape[0]
    n_total = n0 + n1 + n2

    # Single global row space (nodes ++ edges ++ cycles): the scatter kernels
    # write directly into full (n_pad, H) buffers; rows that receive no message
    # (node-boundary, cycle-upper) are naturally zero.
    feat_all = jnp.concatenate([node_feat, edge_feat, cycle_feat], axis=0)

    tn = min(512, _round_up(n_total, 8))
    n_pad = _round_up(n_total, tn)
    feat_all_p = jnp.pad(feat_all, ((0, n_pad - n_total), (0, 0)))

    # ---- upper-adjacency messages (node- and edge-receivers share W_u/b_u) ----
    rec0, send0, com0 = upper_adj_index[0]
    rec1, send1, com1 = upper_adj_index[1]
    up_rec = jnp.concatenate([rec0.astype(jnp.int32),
                              rec1.astype(jnp.int32) + n0])
    up_send = jnp.concatenate([send0.astype(jnp.int32),
                               send1.astype(jnp.int32) + n0])
    up_com = jnp.concatenate([com0.astype(jnp.int32) + n0,
                              com1.astype(jnp.int32) + n0 + n1])
    te_u = min(1024, _round_up(up_rec.shape[0], 128))
    up_rec_p, up_msgs = _prepare_messages(feat_all, up_rec, [up_send, up_com], te_u)
    h_up = _msg_linear(up_msgs, w_u, b_u, te_u)                  # (Eu_pad, H) bf16
    upper_all = _segment_scatter(up_rec_p, h_up, n_total, tn, te_u, n_pad)

    # ---- boundary messages (edge- and cycle-receivers share W_b/b_b) ---------
    brec0, bsend0 = boundary_index[0]
    brec1, bsend1 = boundary_index[1]
    bd_rec = jnp.concatenate([brec0.astype(jnp.int32) + n0,
                              brec1.astype(jnp.int32) + n0 + n1])
    bd_send = jnp.concatenate([bsend0.astype(jnp.int32),
                               bsend1.astype(jnp.int32) + n0])
    te_b = min(1024, _round_up(bd_rec.shape[0], 128))
    bd_rec_p, bd_msgs = _prepare_messages(feat_all, bd_rec, [bd_send], te_b)
    h_bd = _msg_linear(bd_msgs, w_b, b_b, te_b)                  # (Eb_pad, H) bf16
    boundary_all = _segment_scatter(bd_rec_p, h_bd, n_total, tn, te_b, n_pad)

    # ---- final h_update over all cells (no concat, no zero-padding) ----------
    wh_blocks = [w_h[0:h], w_h[h:2 * h], w_h[2 * h:3 * h]]
    out = _update_linear(feat_all_p, boundary_all, upper_all, wh_blocks, b_h, tn)
    return out[:n_total]


# -------------------------- pure-JAX reference ----------------------------- #

def cwn_layer_reference(params, node_feat, edge_feat, cycle_feat,
                        boundary_index, upper_adj_index):
    h = node_feat.shape[1]
    w_b, b_b = params["boundary"]
    w_u, b_u = params["upper"]
    w_h, b_h = params["h_update"]
    n0, n1, n2 = node_feat.shape[0], edge_feat.shape[0], cycle_feat.shape[0]

    def lin(x, w, b):
        return x @ w + b

    node_boundary = jnp.zeros((n0, h), jnp.float32)
    rec, send, common = upper_adj_index[0]
    m = lin(jnp.concatenate([node_feat[rec], node_feat[send], edge_feat[common]], 1), w_u, b_u)
    node_upper = jax.ops.segment_sum(m, rec, num_segments=n0)
    node_messages = jnp.concatenate([node_feat, node_boundary, node_upper], 1)

    rec, send = boundary_index[0]
    m = lin(jnp.concatenate([edge_feat[rec], node_feat[send]], 1), w_b, b_b)
    edge_boundary = jax.ops.segment_sum(m, rec, num_segments=n1)
    rec, send, common = upper_adj_index[1]
    m = lin(jnp.concatenate([edge_feat[rec], edge_feat[send], cycle_feat[common]], 1), w_u, b_u)
    edge_upper = jax.ops.segment_sum(m, rec, num_segments=n1)
    edge_messages = jnp.concatenate([edge_feat, edge_boundary, edge_upper], 1)

    rec, send = boundary_index[1]
    m = lin(jnp.concatenate([cycle_feat[rec], edge_feat[send]], 1), w_b, b_b)
    cycle_boundary = jax.ops.segment_sum(m, rec, num_segments=n2)
    cycle_upper = jnp.zeros((n2, h), jnp.float32)
    cycle_messages = jnp.concatenate([cycle_feat, cycle_boundary, cycle_upper], 1)

    update_rows = jnp.concatenate([node_messages, edge_messages, cycle_messages], 0)
    return lin(update_rows, w_h, b_h)


# ----------------------------- parameter init ------------------------------ #

def _init_linear(key, fan_in, fan_out):
    # PyTorch nn.Linear default: U(-1/sqrt(fan_in), 1/sqrt(fan_in)) for W and b.
    kw, kb = jax.random.split(key)
    bound = 1.0 / (fan_in ** 0.5)
    w = jax.random.uniform(kw, (fan_in, fan_out), jnp.float32, -bound, bound)
    b = jax.random.uniform(kb, (1, fan_out), jnp.float32, -bound, bound)
    return w, b


if __name__ == "__main__":
    key = jax.random.PRNGKey(0)
    H = 32                      # num_hidden
    N0, N1, N2 = 16, 24, 8      # nodes, edges, cycles
    E0, E1 = 32, 40             # upper-adjacency message counts (nodes, edges)
    B0, B1 = 48, 32             # boundary message counts (edges, cycles)

    ks = jax.random.split(key, 14)

    node_feat = jax.random.normal(ks[0], (N0, H), jnp.float32)
    edge_feat = jax.random.normal(ks[1], (N1, H), jnp.float32)
    cycle_feat = jax.random.normal(ks[2], (N2, H), jnp.float32)

    # upper_adj_index[0]: (rec, send) index nodes, common indexes edges
    ua0 = (jax.random.randint(ks[3], (E0,), 0, N0),
           jax.random.randint(ks[4], (E0,), 0, N0),
           jax.random.randint(ks[5], (E0,), 0, N1))
    # upper_adj_index[1]: (rec, send) index edges, common indexes cycles
    ua1 = (jax.random.randint(ks[6], (E1,), 0, N1),
           jax.random.randint(ks[7], (E1,), 0, N1),
           jax.random.randint(ks[8], (E1,), 0, N2))
    # boundary_index[0]: rec indexes edges, send indexes nodes
    bi0 = (jax.random.randint(ks[9], (B0,), 0, N1),
           jax.random.randint(ks[10], (B0,), 0, N0))
    # boundary_index[1]: rec indexes cycles, send indexes edges
    bi1 = (jax.random.randint(ks[11], (B1,), 0, N2),
           jax.random.randint(ks[12], (B1,), 0, N1))

    pk = jax.random.split(ks[13], 3)
    params = {
        "boundary": _init_linear(pk[0], 2 * H, H),   # boundary_message_mlp
        "upper":    _init_linear(pk[1], 3 * H, H),   # upper_adj_message_mlp
        "h_update": _init_linear(pk[2], 3 * H, H),   # h_update
    }

    out = cwn_layer_forward(params, node_feat, edge_feat, cycle_feat,
                            [bi0, bi1], [ua0, ua1])
    out = jax.block_until_ready(out)

    ref = cwn_layer_reference(params, node_feat, edge_feat, cycle_feat,
                              [bi0, bi1], [ua0, ua1])
    assert out.shape == (N0 + N1 + N2, H)
    # bf16 MXU operands vs fp32 reference -> loosened tolerance
    assert jnp.allclose(out, ref, rtol=5e-2, atol=5e-2), "mismatch vs reference"

    print("KERNEL_OK")
</pallas_src>

<mosaic_0001>
module attributes {stable_mosaic.version = 11 : i64} {
  func.func @_msg_linear_kernel(%arg0: i32, %arg1: memref<128x96xf32, #tpu.memory_space<vmem>>, %arg2: memref<96x32xbf16, #tpu.memory_space<vmem>>, %arg3: memref<1x32xf32, #tpu.memory_space<vmem>>, %arg4: memref<128x32xbf16, #tpu.memory_space<vmem>>) attributes {dimension_semantics = [#tpu.dimension_semantics<parallel>], iteration_bounds = array<i64: 1>, scalar_prefetch = 0 : i64, scratch_operands = 0 : i64, tpu.core_type = #tpu.core_type<tc>, window_params = [{transform_indices = @transform_0, window_bounds = array<i64: 128, 96>}, {pipeline_mode = #tpu.pipeline_mode<synchronous>, transform_indices = @transform_1, window_bounds = array<i64: 96, 32>}, {pipeline_mode = #tpu.pipeline_mode<synchronous>, transform_indices = @transform_2, window_bounds = array<i64: 1, 32>}, {transform_indices = @transform_3, window_bounds = array<i64: 128, 32>}]} {
    %c0 = arith.constant 0 : index
    %c0_0 = arith.constant 0 : index
    %0 = vector.load %arg1[%c0, %c0_0] : memref<128x96xf32, #tpu.memory_space<vmem>>, vector<128x96xf32>
    %1 = arith.truncf %0 : vector<128x96xf32> to vector<128x96xbf16>
    %c0_1 = arith.constant 0 : index
    %c0_2 = arith.constant 0 : index
    %2 = vector.load %arg2[%c0_1, %c0_2] : memref<96x32xbf16, #tpu.memory_space<vmem>>, vector<96x32xbf16>
    %cst = arith.constant dense<0.000000e+00> : vector<128x32xf32>
    %3 = tpu.matmul %1, %2, %cst {dimension_numbers = #tpu.dot_dimension_numbers<[1], [0], [0], [1], [0, 0, 1, 1], [], []>} : vector<128x96xbf16>, vector<96x32xbf16>, vector<128x32xf32> -> vector<128x32xf32>
    %c0_3 = arith.constant 0 : index
    %c0_4 = arith.constant 0 : index
    %4 = vector.load %arg3[%c0_3, %c0_4] : memref<1x32xf32, #tpu.memory_space<vmem>>, vector<1x32xf32>
    %5 = vector.broadcast %4 : vector<1x32xf32> to vector<128x32xf32>
    %6 = arith.addf %3, %5 : vector<128x32xf32>
    %7 = arith.truncf %6 : vector<128x32xf32> to vector<128x32xbf16>
    %c0_5 = arith.constant 0 : index
    %c0_6 = arith.constant 0 : index
    %8 = vector.load %arg4[%c0_5, %c0_6] : memref<128x32xbf16, #tpu.memory_space<vmem>>, vector<128x32xbf16>
    tpu.vector_store %arg4[%c0_5, %c0_6], %7 {strides = array<i32>} : memref<128x32xbf16, #tpu.memory_space<vmem>>, vector<128x32xbf16>,
    return
  }
  func.func @transform_0(%arg0: i32) -> (i32, i32) {
    %c0_i32 = arith.constant 0 : i32
    %c0_i32_0 = arith.constant 0 : i32
    return %arg0, %c0_i32 : i32, i32
  }
  func.func @transform_1(%arg0: i32) -> (i32, i32) {
    %c0_i32 = arith.constant 0 : i32
    %c0_i32_0 = arith.constant 0 : i32
    %c0_i32_1 = arith.constant 0 : i32
    return %c0_i32, %c0_i32_0 : i32, i32
  }
  func.func @transform_2(%arg0: i32) -> (i32, i32) {
    %c0_i32 = arith.constant 0 : i32
    %c0_i32_0 = arith.constant 0 : i32
    %c0_i32_1 = arith.constant 0 : i32
    return %c0_i32, %c0_i32_0 : i32, i32
  }
  func.func @transform_3(%arg0: i32) -> (i32, i32) {
    %c0_i32 = arith.constant 0 : i32
    %c0_i32_0 = arith.constant 0 : i32
    return %arg0, %c0_i32 : i32, i32
  }
}

</mosaic_0001>

<llo_original>
// kernel: tpu_custom_call.1
$region0: #{tpu_custom_call.1}
  #allocation0 [shape = 'u32[]', space=smem, size = 0x4, offset = 0x4, fixed_abs, tag = 'smem constant byte address 0x4 - core index']
  #allocation1 [shape = 'u32[144,128]{1,0:T(1,128)}', space=vmem, size = 0x12000, scoped, tag = 'internal scratch']
  %s0 = inlined_call_operand.vmem [shape: f32[128,96], index: 0, kind: input, shape index: {}]
  %s1 = inlined_call_operand.vmem [shape: bf16[96,32], index: 1, kind: input, shape index: {}]
  %s2 = inlined_call_operand.vmem [shape: f32[1,32], index: 2, kind: input, shape index: {}]
  %s3 = inlined_call_operand.vmem [shape: bf16[128,32], index: 3, kind: output, shape index: {}]
  %s4 = sld [smem:[#allocation0]]
  $region22: #{tpu_custom_call.1} parent=0
    _
  %s6 = ssub.s32 1, %s4
  %s7 = scalar_select 0, %s6, %s4
  // Predicated region
  $region2: #{tpu_custom_call.1} parent=0 // pred_check
    _
  $region3: #{tpu_custom_call.1} parent=0 // pred_check_branch
    %9 = sbr.rel (0) target = $region5
  $region4: #{tpu_custom_call.1} parent=0 // pred_region
    _
  $region5: #{tpu_custom_call.1} parent=0 // pred_fallthru
    _
  // Predicated region
  $region6: #{tpu_custom_call.1} parent=0 // pred_check
    _
  $region7: #{tpu_custom_call.1} parent=0 // pred_check_branch
    %11 = sbr.rel (0) target = $region9
  $region8: #{tpu_custom_call.1} parent=0 // pred_region
    _
  $region9: #{tpu_custom_call.1} parent=0 // pred_fallthru
    _
  // Predicated region
  $region10: #{tpu_custom_call.1} parent=0 // pred_check
    _
  $region11: #{tpu_custom_call.1} parent=0 // pred_check_branch
    %13 = sbr.rel (0) target = $region13
  $region12: #{tpu_custom_call.1} parent=0 // pred_region
    _
  $region13: #{tpu_custom_call.1} parent=0 // pred_fallthru
    _
  %v15 = vld [vmem:[%s0] sm:$0xff]
  %v16 = vld [vmem:[%s0 + $0x8] sm:$0xff]
  %v17 = vld [vmem:[%s0 + $0x10] sm:$0xff]
  %v18 = vld [vmem:[%s0 + $0x18] sm:$0xff]
  %v19 = vld [vmem:[%s0 + $0x20] sm:$0xff]
  %v20 = vld [vmem:[%s0 + $0x28] sm:$0xff]
  %v21 = vld [vmem:[%s0 + $0x30] sm:$0xff]
  %v22 = vld [vmem:[%s0 + $0x38] sm:$0xff]
  %v23 = vld [vmem:[%s0 + $0x40] sm:$0xff]
  %v24 = vld [vmem:[%s0 + $0x48] sm:$0xff]
  %v25 = vld [vmem:[%s0 + $0x50] sm:$0xff]
  %v26 = vld [vmem:[%s0 + $0x58] sm:$0xff]
  %v27 = vld [vmem:[%s0 + $0x60] sm:$0xff]
  %v28 = vld [vmem:[%s0 + $0x68] sm:$0xff]
  %v29 = vld [vmem:[%s0 + $0x70] sm:$0xff]
  %v30 = vld [vmem:[%s0 + $0x78] sm:$0xff]
  %v31 = vpack.c.bf16 %v16, %v15
  %v32 = vpack.c.bf16 %v18, %v17
  %v33 = vpack.c.bf16 %v20, %v19
  %v34 = vpack.c.bf16 %v22, %v21
  %v35 = vpack.c.bf16 %v24, %v23
  %v36 = vpack.c.bf16 %v26, %v25
  %v37 = vpack.c.bf16 %v28, %v27
  %v38 = vpack.c.bf16 %v30, %v29
  %v39 = vld [vmem:[%s1] sm:$0xf]
  %v40 = vld [vmem:[%s1 + $0x4] sm:$0xf]
  %v41 = vld [vmem:[%s1 + $0x8] sm:$0xf]
  %v42 = vld [vmem:[%s1 + $0xc] sm:$0xf]
  %v43 = vld [vmem:[%s1 + $0x10] sm:$0xf]
  %v44 = vld [vmem:[%s1 + $0x14] sm:$0xf]
  %v45 = vld [vmem:[%s1 + $0x18] sm:$0xf]
  %v46 = vld [vmem:[%s1 + $0x1c] sm:$0xf]
  %v47 = vld [vmem:[%s1 + $0x20] sm:$0xf]
  %v48 = vld [vmem:[%s1 + $0x24] sm:$0xf]
  %v49 = vld [vmem:[%s1 + $0x28] sm:$0xf]
  %v50 = vld [vmem:[%s1 + $0x2c] sm:$0xf]
  %v51 = vld [vmem:[%s2] sm:$0x1]
  %v53 = vlaneseq
  %v54 = vshrl.u32 %v53, 7
  %v55 = vsub.s32 0, %v54
  %v56 = vrot.slane %v51, %v55
  %v70 = vunpack.c.l.b16 %v39
  %v71 = vunpack.c.l.b16 %v40
  %v72 = vunpack.c.l.b16 %v41
  %v73 = vunpack.c.l.b16 %v42
  %v74 = vunpack.c.l.b16 %v43
  %v75 = vunpack.c.l.b16 %v44
  %v76 = vunpack.c.l.b16 %v45
  %v77 = vunpack.c.l.b16 %v46
  %v78 = vunpack.c.l.b16 %v47
  %v79 = vunpack.c.l.b16 %v48
  %v80 = vunpack.c.l.b16 %v49
  %v81 = vunpack.c.l.b16 %v50
  %v82 = vpack.c.b16 %v71, %v70
  %v83 = vpack.c.b16 %v73, %v72
  %v84 = vpack.c.b16 %v75, %v74
  %v85 = vpack.c.b16 %v77, %v76
  %v86 = vpack.c.b16 %v79, %v78
  %v87 = vpack.c.b16 %v81, %v80
  %vm94 = vcmask 785408
  %v96 = vsel %vm94, %v31, 0
  %v99 = vsel %vm94, %v32, 0
  %v102 = vsel %vm94, %v33, 0
  %v105 = vsel %vm94, %v34, 0
  %v108 = vsel %vm94, %v35, 0
  %v111 = vsel %vm94, %v36, 0
  %v114 = vsel %vm94, %v37, 0
  %v117 = vsel %vm94, %v38, 0
  %119 = vmatprep.subr.bf16.mxu0 0
  %120 = vmatpush1.bf16.msra.mxu0 0
  %121 = vmatprep.subr.bf16.mxu0 0
  %122 = vmatpush1.bf16.msra.mxu0 0
  %123 = vmatprep.subr.bf16.mxu0 0
  %124 = vmatpush1.bf16.msra.mxu0 %v87
  %125 = vmatprep.subr.bf16.mxu0 0
  %126 = vmatpush1.bf16.msra.mxu0 %v86
  %127 = vmatprep.subr.bf16.mxu0 0
  %128 = vmatpush1.bf16.msra.mxu0 %v85
  %129 = vmatprep.subr.bf16.mxu0 0
  %130 = vmatpush1.bf16.msra.mxu0 %v84
  %131 = vmatprep.subr.bf16.mxu0 0
  %132 = vmatpush1.bf16.msra.mxu0 %v83
  %133 = vmatprep.subr.bf16.mxu0 0
  %134 = vmatpush1.bf16.msra.mxu0 %v82
  %135 = vmatprep.subr.bf16.mxu0 0
  %136 = vmatpush2.bf16.msra.mxu0 0
  %137 = vmatprep.subr.bf16.mxu0 0
  %138 = vmatpush2.bf16.msra.mxu0 0
  %139 = vmatprep.subr.bf16.mxu0 0
  %140 = vmatpush2.bf16.msra.mxu0 0
  %141 = vmatprep.subr.bf16.mxu0 0
  %142 = vmatpush2.bf16.msra.mxu0 0
  %143 = vmatprep.subr.bf16.mxu0 0
  %144 = vmatpush2.bf16.msra.mxu0 0
  %145 = vmatprep.subr.bf16.mxu0 0
  %146 = vmatpush2.bf16.msra.mxu0 0
  %147 = vmatprep.subr.bf16.mxu0 0
  %148 = vmatpush2.bf16.msra.mxu0 0
  %149 = vmatprep.subr.bf16.mxu0 0
  %150 = vmatpush2.bf16.msra.mxu0 0
  %151 = vmatprep.mubr.bf16.mxu0 0
  %152 = vmatmul.mubr.bf16.gmra.mxu0 %v96
  %v153 = vpop.f32.mrf.mxu0
  %v154 = vadd.f32 %v56, %v153
  %v155 = vpop.f32.mrf.mxu0
  %v156 = vpop.f32.mrf.mxu0
  %v157 = vadd.f32 %v56, %v156
  %v158 = vpop.f32.mrf.mxu0
  %159 = vmatprep.mubr.bf16.mxu0 0
  %160 = vmatmul.mubr.bf16.gmra.mxu0 %v99
  %v161 = vpop.f32.mrf.mxu0
  %v162 = vadd.f32 %v56, %v161
  %v163 = vpop.f32.mrf.mxu0
  %v164 = vpop.f32.mrf.mxu0
  %v165 = vadd.f32 %v56, %v164
  %v166 = vpop.f32.mrf.mxu0
  %167 = vmatprep.mubr.bf16.mxu0 0
  %168 = vmatmul.mubr.bf16.gmra.mxu0 %v102
  %v169 = vpop.f32.mrf.mxu0
  %v170 = vadd.f32 %v56, %v169
  %v171 = vpop.f32.mrf.mxu0
  %v172 = vpop.f32.mrf.mxu0
  %v173 = vadd.f32 %v56, %v172
  %v174 = vpop.f32.mrf.mxu0
  %175 = vmatprep.mubr.bf16.mxu0 0
  %176 = vmatmul.mubr.bf16.gmra.mxu0 %v105
  %v177 = vpop.f32.mrf.mxu0
  %v178 = vadd.f32 %v56, %v177
  %v179 = vpop.f32.mrf.mxu0
  %v180 = vpop.f32.mrf.mxu0
  %v181 = vadd.f32 %v56, %v180
  %v182 = vpop.f32.mrf.mxu0
  %183 = vmatprep.mubr.bf16.mxu0 0
  %184 = vmatmul.mubr.bf16.gmra.mxu0 %v108
  %v185 = vpop.f32.mrf.mxu0
  %v186 = vadd.f32 %v56, %v185
  %v187 = vpop.f32.mrf.mxu0
  %v188 = vpop.f32.mrf.mxu0
  %v189 = vadd.f32 %v56, %v188
  %v190 = vpop.f32.mrf.mxu0
  %191 = vmatprep.mubr.bf16.mxu0 0
  %192 = vmatmul.mubr.bf16.gmra.mxu0 %v111
  %v193 = vpop.f32.mrf.mxu0
  %v194 = vadd.f32 %v56, %v193
  %v195 = vpop.f32.mrf.mxu0
  %v196 = vpop.f32.mrf.mxu0
  %v197 = vadd.f32 %v56, %v196
  %v198 = vpop.f32.mrf.mxu0
  %199 = vmatprep.mubr.bf16.mxu0 0
  %200 = vmatmul.mubr.bf16.gmra.mxu0 %v114
  %v201 = vpop.f32.mrf.mxu0
  %v202 = vadd.f32 %v56, %v201
  %v203 = vpop.f32.mrf.mxu0
  %v204 = vpop.f32.mrf.mxu0
  %v205 = vadd.f32 %v56, %v204
  %v206 = vpop.f32.mrf.mxu0
  %207 = vmatprep.mubr.bf16.mxu0 0
  %208 = vmatmul.mubr.bf16.gmra.mxu0 %v117
  %v209 = vpop.f32.mrf.mxu0
  %v210 = vadd.f32 %v56, %v209
  %v211 = vpop.f32.mrf.mxu0
  %v212 = vpop.f32.mrf.mxu0
  %v213 = vadd.f32 %v56, %v212
  %v214 = vpop.f32.mrf.mxu0
  %215 = vdwg.mxu0
  %v216 = vpack.c.bf16 %v157, %v154
  %v217 = vpack.c.bf16 %v165, %v162
  %v218 = vpack.c.bf16 %v173, %v170
  %v219 = vpack.c.bf16 %v181, %v178
  %v220 = vpack.c.bf16 %v189, %v186
  %v221 = vpack.c.bf16 %v197, %v194
  %v222 = vpack.c.bf16 %v205, %v202
  %v223 = vpack.c.bf16 %v213, %v210
  %v232 = vunpack.c.l.b16 %v216
  %v233 = vunpack.c.h.b16 %v216
  %v234 = vunpack.c.l.b16 %v217
  %v235 = vunpack.c.h.b16 %v217
  %v236 = vunpack.c.l.b16 %v218
  %v237 = vunpack.c.h.b16 %v218
  %v238 = vunpack.c.l.b16 %v219
  %v239 = vunpack.c.h.b16 %v219
  %v240 = vunpack.c.l.b16 %v220
  %v241 = vunpack.c.h.b16 %v220
  %v242 = vunpack.c.l.b16 %v221
  %v243 = vunpack.c.h.b16 %v221
  %v244 = vunpack.c.l.b16 %v222
  %v245 = vunpack.c.h.b16 %v222
  %v246 = vunpack.c.l.b16 %v223
  %v247 = vunpack.c.h.b16 %v223
  %v248 = vpack.c.b16 %v232, %v232
  %v249 = vpack.c.b16 %v233, %v233
  %v250 = vpack.c.b16 %v234, %v234
  %v251 = vpack.c.b16 %v235, %v235
  %v252 = vpack.c.b16 %v236, %v236
  %v253 = vpack.c.b16 %v237, %v237
  %v254 = vpack.c.b16 %v238, %v238
  %v255 = vpack.c.b16 %v239, %v239
  %v256 = vpack.c.b16 %v240, %v240
  %v257 = vpack.c.b16 %v241, %v241
  %v258 = vpack.c.b16 %v242, %v242
  %v259 = vpack.c.b16 %v243, %v243
  %v260 = vpack.c.b16 %v244, %v244
  %v261 = vpack.c.b16 %v245, %v245
  %v262 = vpack.c.b16 %v246, %v246
  %v263 = vpack.c.b16 %v247, %v247
  %vm280 = vcmask 257024
  %281 = vst.msk [vmem:[%s3] sm:$0xf] %vm280, %v248
  %282 = vst.msk [vmem:[%s3 + $0x4] sm:$0xf] %vm280, %v249
  %283 = vst.msk [vmem:[%s3 + $0x8] sm:$0xf] %vm280, %v250
  %284 = vst.msk [vmem:[%s3 + $0xc] sm:$0xf] %vm280, %v251
  %285 = vst.msk [vmem:[%s3 + $0x10] sm:$0xf] %vm280, %v252
  %286 = vst.msk [vmem:[%s3 + $0x14] sm:$0xf] %vm280, %v253
  %287 = vst.msk [vmem:[%s3 + $0x18] sm:$0xf] %vm280, %v254
  %288 = vst.msk [vmem:[%s3 + $0x1c] sm:$0xf] %vm280, %v255
  %289 = vst.msk [vmem:[%s3 + $0x20] sm:$0xf] %vm280, %v256
  %290 = vst.msk [vmem:[%s3 + $0x24] sm:$0xf] %vm280, %v257
  %291 = vst.msk [vmem:[%s3 + $0x28] sm:$0xf] %vm280, %v258
  %292 = vst.msk [vmem:[%s3 + $0x2c] sm:$0xf] %vm280, %v259
  %293 = vst.msk [vmem:[%s3 + $0x30] sm:$0xf] %vm280, %v260
  %294 = vst.msk [vmem:[%s3 + $0x34] sm:$0xf] %vm280, %v261
  %295 = vst.msk [vmem:[%s3 + $0x38] sm:$0xf] %vm280, %v262
  %296 = vst.msk [vmem:[%s3 + $0x3c] sm:$0xf] %vm280, %v263
  // Predicated region
  $region14: #{tpu_custom_call.1} parent=0 // pred_check
    _
  $region15: #{tpu_custom_call.1} parent=0 // pred_check_branch
    %298 = sbr.rel (0) target = $region17
  $region16: #{tpu_custom_call.1} parent=0 // pred_region
    _
  $region17: #{tpu_custom_call.1} parent=0 // pred_fallthru
    _
  // Predicated region
  $region18: #{tpu_custom_call.1} parent=0 // pred_check
    _
  $region19: #{tpu_custom_call.1} parent=0 // pred_check_branch
    %300 = sbr.rel (0) target = $region21
  $region20: #{tpu_custom_call.1} parent=0 // pred_region
    _
  $region21: #{tpu_custom_call.1} parent=0 // pred_fallthru
    _

</llo_original>
